<compile_context>
chip_gen: v7x
topology: tpu7x:2x2x1
jax: 0.10.0
libtpu: 0.0.40
codegen_flags: <defaults>
</compile_context>

<pallas_src>
import jax
import jax.numpy as jnp
from jax import lax
from jax.experimental import pallas as pl
from jax.experimental.pallas import tpu as pltpu

LANES = 128
SUBLANES = 8


def _fold_rows(x):
    """(r, 128) -> (8, 128) pairwise fold; r must be 8 * 2**k.

    Every slice boundary is a multiple of 8 sublanes, so this is pure
    element-wise VPU work (no relayout).
    """
    while x.shape[0] > SUBLANES:
        h = x.shape[0] // 2
        x = x[:h, :] + x[h:, :]
    return x


def _make_kernel(tile_rows, chunk_rows, tiles_per_core, valid_rows):
    n_chunks = tile_rows // chunk_rows

    def kernel(yp_ref, yt_ref, acc_ref):
        # Zero the resident accumulator at the start of each reduction sweep.
        @pl.when(pl.program_id(1) == 0)
        def _():
            acc_ref[...] = jnp.zeros_like(acc_ref)

        # Global (unclamped) row offset of this block.  Used to mask rows that
        # fall beyond the valid extent: the padded tail of a partial last
        # block, and any fully out-of-range duplicate block on the last core
        # (its index_map is clamped, so the DMA is in-bounds but the data is
        # a re-read that must contribute zero).
        block_idx = pl.program_id(0) * tiles_per_core + pl.program_id(1)
        row0 = block_idx * tile_rows

        # Hoisted iota (broadcast_in_dim is not CSE'd inside the loop).
        local_rows = lax.broadcasted_iota(jnp.int32, (chunk_rows, 1), 0)

        def body(i, carry):
            r = pl.multiple_of(i * chunk_rows, chunk_rows)
            p = yp_ref[pl.ds(r, chunk_rows), :].astype(jnp.float32)
            t = yt_ref[pl.ds(r, chunk_rows), :].astype(jnp.float32)
            d = p - t
            sq = d * d
            # Row-granular validity mask; jnp.where does not propagate
            # NaN/Inf from the unselected (garbage) branch.
            ok = (row0 + r + local_rows) < valid_rows
            sq = jnp.where(ok, sq, 0.0)
            return carry + _fold_rows(sq)

        part = lax.fori_loop(
            0, n_chunks, body,
            jnp.zeros((SUBLANES, LANES), jnp.float32),
            unroll=True)
        acc_ref[...] += part

    return kernel


def _input_spec(tile_rows, index_map, tiles_per_core):
    # Deeper buffering only pays off on a long reduction stream.
    if tiles_per_core >= 3 and hasattr(pl, "Buffered"):
        try:
            return pl.BlockSpec((tile_rows, LANES), index_map,
                                pipeline_mode=pl.Buffered(3))
        except TypeError:  # older BlockSpec signature
            pass
    return pl.BlockSpec((tile_rows, LANES), index_map)


def _sse_partials(slab_p, slab_t, *, tile_rows, chunk_rows, nc,
                  tiles_per_core, valid_rows):
    """Streaming sum-of-squared-differences over the (rows, 128) slab.

    Returns (nc*8, 128) f32 lane-dense partial sums.
    """
    total_tiles = pl.cdiv(valid_rows, tile_rows)
    last_tile = total_tiles - 1

    def in_map(c, j):
        # Clamp so no block start lies past the array (DMA stays in bounds);
        # the kernel masks the duplicate via the *unclamped* program ids.
        return (jnp.minimum(c * tiles_per_core + j, last_tile), 0)

    in_spec = _input_spec(tile_rows, in_map, tiles_per_core)
    out_spec = pl.BlockSpec((SUBLANES, LANES), lambda c, j: (c, 0))

    kernel = _make_kernel(tile_rows, chunk_rows, tiles_per_core, valid_rows)

    n_in_elems = int(slab_p.size)
    cost = pl.CostEstimate(
        flops=3 * n_in_elems,
        transcendentals=0,
        bytes_accessed=2 * n_in_elems * slab_p.dtype.itemsize
        + nc * SUBLANES * LANES * 4,
    )

    return pl.pallas_call(
        kernel,
        out_shape=jax.ShapeDtypeStruct((nc * SUBLANES, LANES), jnp.float32),
        grid_spec=pltpu.PrefetchScalarGridSpec(
            num_scalar_prefetch=0,
            grid=(nc, tiles_per_core),
            in_specs=[in_spec, in_spec],
            out_specs=out_spec,
        ),
        compiler_params=pltpu.CompilerParams(
            # axis 0: independent per-core partials (megacore on v7x);
            # axis 1: the streaming reduction (accumulator resident in VMEM).
            dimension_semantics=("parallel", "arbitrary"),
        ),
        cost_estimate=cost,
    )(slab_p, slab_t)


def _default_tile_rows():
    try:
        kind = jax.devices()[0].device_kind.lower()
    except Exception:
        kind = ""
    if "v7" in kind:
        # 2 MiB/block x 2 inputs x <=3 buffers = 12 MiB, inside v7x's scoped
        # default; bigger steps amortize per-grid-step overhead vs 3.2 TB/s.
        return 4096
    # v5e / v6e: near the roofline knee; 6 MiB of input buffering max.
    return 2048


def rmse_loss(y_pred, y_true, *, tile_rows=None, n_parallel=2, chunk_rows=256):
    """sqrt(mean((y_pred - y_true) ** 2))  --  torch RMSELoss.forward."""
    assert y_pred.shape == y_true.shape, "y_pred / y_true shape mismatch"
    n_elem = int(y_pred.size)
    assert n_elem > 0, "empty input"

    if tile_rows is None:
        tile_rows = _default_tile_rows()
    # powers of two so the in-kernel pairwise fold lands exactly on (8,128)
    assert tile_rows >= SUBLANES and (tile_rows & (tile_rows - 1)) == 0
    assert chunk_rows >= SUBLANES and (chunk_rows & (chunk_rows - 1)) == 0
    assert n_parallel >= 1

    yp = jnp.ravel(y_pred)
    yt = jnp.ravel(y_true)

    itemsize = jnp.dtype(y_pred.dtype).itemsize
    # minimal sublane tile: 8 for 32-bit, 16 for 16-bit, 32 for 8-bit dtypes
    min_rows = max(SUBLANES, 32 // max(itemsize, 1))

    rem = n_elem % LANES
    rows = (n_elem - rem) // LANES

    if rows == 0:
        # Tiny input (< 128 elements): pad both operands with zeros up to one
        # minimal tile; padded positions contribute (0 - 0)^2 = 0.
        pad = min_rows * LANES - n_elem
        slab_p = jnp.pad(yp, (0, pad)).reshape(min_rows, LANES)
        slab_t = jnp.pad(yt, (0, pad)).reshape(min_rows, LANES)
        rows = min_rows
        tail_sse = jnp.float32(0.0)
    else:
        if rem:
            # Peel only the <128-element ragged remainder in plain JAX.
            dt = (yp[rows * LANES:].astype(jnp.float32)
                  - yt[rows * LANES:].astype(jnp.float32))
            tail_sse = jnp.sum(dt * dt)
            yp = yp[: rows * LANES]
            yt = yt[: rows * LANES]
        else:
            tail_sse = jnp.float32(0.0)
        # Multiple-of-128 prefix: reshape only (a bitcast when rem == 0).
        slab_p = yp.reshape(rows, LANES)
        slab_t = yt.reshape(rows, LANES)

    # Shrink the tile for small inputs (power of two, >= min_rows); the edge
    # block is padded by Pallas and masked in-kernel, so no wrapper-side pad.
    eff_tile = min(tile_rows, max(min_rows, pl.next_power_of_2(rows)))
    eff_chunk = min(chunk_rows, eff_tile)

    total_tiles = pl.cdiv(rows, eff_tile)
    nc = n_parallel if total_tiles >= n_parallel else 1
    tiles_per_core = pl.cdiv(total_tiles, nc)

    partials = _sse_partials(
        slab_p, slab_t,
        tile_rows=eff_tile, chunk_rows=eff_chunk, nc=nc,
        tiles_per_core=tiles_per_core, valid_rows=rows,
    )

    sse = jnp.sum(partials, dtype=jnp.float32) + tail_sse
    return jnp.sqrt(sse / jnp.float32(n_elem))


if __name__ == "__main__":
    rmse = jax.jit(rmse_loss)

    def check(shape, k):
        k1, k2 = jax.random.split(k)
        yp = jax.random.normal(k1, shape, dtype=jnp.float32)
        yt = jax.random.normal(k2, shape, dtype=jnp.float32)
        out = rmse(yp, yt)
        jax.block_until_ready(out)
        ref = jnp.sqrt(jnp.mean((yp - yt) ** 2))
        assert jnp.allclose(out, ref, rtol=1e-5, atol=1e-6), (shape, out, ref)
        return out

    key = jax.random.PRNGKey(0)
    k0, k1, k2 = jax.random.split(key, 3)

    # Primary: NCHW-style prediction/target pair (as in the training script).
    check((2, 4, 16, 16), k0)
    # Ragged path: <128-element tail + partial (masked) last block.
    check((3, 5, 37, 11), k1)
    # Multi-tile path: 2 parallel slices, partial + clamped duplicate block.
    check((25, 200, 128), k2)

    print("KERNEL_OK")
</pallas_src>

<mosaic_0001>
module attributes {stable_mosaic.version = 11 : i64} {
  func.func @kernel(%arg0: i32, %arg1: i32, %arg2: memref<16x128xf32, #tpu.memory_space<vmem>>, %arg3: memref<16x128xf32, #tpu.memory_space<vmem>>, %arg4: memref<8x128xf32, #tpu.memory_space<vmem>>) attributes {dimension_semantics = [#tpu.dimension_semantics<parallel>, #tpu.dimension_semantics<arbitrary>], iteration_bounds = array<i64: 1, 1>, scalar_prefetch = 0 : i64, scratch_operands = 0 : i64, tpu.core_type = #tpu.core_type<tc>, window_params = [{transform_indices = @transform_0, window_bounds = array<i64: 16, 128>}, {transform_indices = @transform_1, window_bounds = array<i64: 16, 128>}, {transform_indices = @transform_2, window_bounds = array<i64: 8, 128>}]} {
    %c0_i32 = arith.constant 0 : i32
    %0 = arith.cmpi eq, %arg1, %c0_i32 : i32
    %1 = arith.extui %0 : i1 to i32
    %c0_i32_0 = arith.constant 0 : i32
    %2 = arith.cmpi ne, %1, %c0_i32_0 : i32
    scf.if %2 {
      %cst_11 = arith.constant 0.000000e+00 : f32
      %32 = vector.broadcast %cst_11 : f32 to vector<8x128xf32>
      %c0_12 = arith.constant 0 : index
      %c0_13 = arith.constant 0 : index
      %33 = vector.load %arg4[%c0_12, %c0_13] : memref<8x128xf32, #tpu.memory_space<vmem>>, vector<8x128xf32>
      tpu.vector_store %arg4[%c0_12, %c0_13], %32 {strides = array<i32>} : memref<8x128xf32, #tpu.memory_space<vmem>>, vector<8x128xf32>,
    } else {
    }
    %c1_i32 = arith.constant 1 : i32
    %3 = arith.muli %arg0, %c1_i32 : i32
    %4 = arith.addi %3, %arg1 : i32
    %c16_i32 = arith.constant 16 : i32
    %5 = arith.muli %4, %c16_i32 : i32
    %6 = tpu.iota {dimensions = array<i32: 0>} : vector<16x1xi32>
    %cst = arith.constant 0.000000e+00 : f32
    %7 = vector.broadcast %cst : f32 to vector<8x128xf32>
    %c0_i32_1 = arith.constant 0 : i32
    %c16_i32_2 = arith.constant 16 : i32
    %8 = arith.muli %c0_i32_1, %c16_i32_2 : i32
    %9 = tpu.assume_multiple %8, 16 : i32
    %10 = arith.index_cast %9 : i32 to index
    %c0 = arith.constant 0 : index
    %11 = vector.load %arg2[%10, %c0] : memref<16x128xf32, #tpu.memory_space<vmem>>, vector<16x128xf32>
    %12 = arith.index_cast %9 : i32 to index
    %c0_3 = arith.constant 0 : index
    %13 = vector.load %arg3[%12, %c0_3] : memref<16x128xf32, #tpu.memory_space<vmem>>, vector<16x128xf32>
    %14 = arith.subf %11, %13 : vector<16x128xf32>
    %15 = arith.mulf %14, %14 : vector<16x128xf32>
    %16 = arith.addi %5, %9 : i32
    %17 = vector.broadcast %16 : i32 to vector<16x1xi32>
    %18 = arith.addi %17, %6 : vector<16x1xi32>
    %c16_i32_4 = arith.constant 16 : i32
    %19 = vector.broadcast %c16_i32_4 : i32 to vector<16x1xi32>
    %20 = arith.cmpi slt, %18, %19 : vector<16x1xi32>
    %cst_5 = arith.constant 0.000000e+00 : f32
    %21 = vector.shape_cast %20 : vector<16x1xi1> to vector<16x1xi1>
    %22 = vector.broadcast %21 : vector<16x1xi1> to vector<16x128xi1>
    %23 = vector.broadcast %cst_5 : f32 to vector<16x128xf32>
    %24 = arith.select %22, %15, %23 : vector<16x128xi1>, vector<16x128xf32>
    %25 = vector.extract_strided_slice %24 {offsets = [0, 0], sizes = [8, 128], strides = [1, 1]} : vector<16x128xf32> to vector<8x128xf32>
    %26 = vector.extract_strided_slice %24 {offsets = [8, 0], sizes = [8, 128], strides = [1, 1]} : vector<16x128xf32> to vector<8x128xf32>
    %27 = arith.addf %25, %26 : vector<8x128xf32>
    %28 = arith.addf %7, %27 : vector<8x128xf32>
    %c1_i32_6 = arith.constant 1 : i32
    %c0_7 = arith.constant 0 : index
    %c0_8 = arith.constant 0 : index
    %29 = vector.load %arg4[%c0_7, %c0_8] : memref<8x128xf32, #tpu.memory_space<vmem>>, vector<8x128xf32>
    %30 = arith.addf %29, %28 : vector<8x128xf32>
    %c0_9 = arith.constant 0 : index
    %c0_10 = arith.constant 0 : index
    %31 = vector.load %arg4[%c0_9, %c0_10] : memref<8x128xf32, #tpu.memory_space<vmem>>, vector<8x128xf32>
    tpu.vector_store %arg4[%c0_9, %c0_10], %30 {strides = array<i32>} : memref<8x128xf32, #tpu.memory_space<vmem>>, vector<8x128xf32>,
    return
  }
  func.func @transform_0(%arg0: i32, %arg1: i32) -> (i32, i32) {
    %c1_i32 = arith.constant 1 : i32
    %0 = arith.muli %arg0, %c1_i32 : i32
    %1 = arith.addi %0, %arg1 : i32
    %c0_i32 = arith.constant 0 : i32
    %2 = arith.minsi %1, %c0_i32 : i32
    %c0_i32_0 = arith.constant 0 : i32
    %c0_i32_1 = arith.constant 0 : i32
    return %2, %c0_i32_0 : i32, i32
  }
  func.func @transform_1(%arg0: i32, %arg1: i32) -> (i32, i32) {
    %c1_i32 = arith.constant 1 : i32
    %0 = arith.muli %arg0, %c1_i32 : i32
    %1 = arith.addi %0, %arg1 : i32
    %c0_i32 = arith.constant 0 : i32
    %2 = arith.minsi %1, %c0_i32 : i32
    %c0_i32_0 = arith.constant 0 : i32
    %c0_i32_1 = arith.constant 0 : i32
    return %2, %c0_i32_0 : i32, i32
  }
  func.func @transform_2(%arg0: i32, %arg1: i32) -> (i32, i32) {
    %c0_i32 = arith.constant 0 : i32
    %c0_i32_0 = arith.constant 0 : i32
    return %arg0, %c0_i32 : i32, i32
  }
}

</mosaic_0001>

<llo_original>
// kernel: rmse_loss.1
$region0: #{rmse_loss.1}
  #allocation0 [shape = 'u32[]', space=smem, size = 0x4, offset = 0x4, fixed_abs, tag = 'smem constant byte address 0x4 - core index']
  #allocation1 [shape = 'u32[144,128]{1,0:T(1,128)}', space=vmem, size = 0x12000, scoped, tag = 'internal scratch']
  %s0 = inlined_call_operand.vmem [shape: f32[16,128], index: 0, kind: input, shape index: {}]
  %s1 = inlined_call_operand.vmem [shape: f32[16,128], index: 1, kind: input, shape index: {}]
  %s2 = inlined_call_operand.vmem [shape: f32[8,128], index: 2, kind: output, shape index: {}]
  %s3 = sld [smem:[#allocation0]]
  $region22: #{rmse_loss.1} parent=0
    _
  %s5 = ssub.s32 1, %s3
  %s6 = scalar_select 0, %s5, %s3
  // Predicated region
  $region2: #{rmse_loss.1} parent=0 // pred_check
    _
  $region3: #{rmse_loss.1} parent=0 // pred_check_branch
    %8 = sbr.rel (0) target = $region5
  $region4: #{rmse_loss.1} parent=0 // pred_region
    %s9 = sadd.s32 0, 0
    %p10 = scmp.lt.s32.totalorder %s9, 0
    %s11 = scalar_select %p10, %s9, 0
    %s12 = smul.u32 2, %s11
    %p13 = scmp.lt.s32.totalorder %s12, 1
    %s14 = scalar_select %p13, %s12, 1
    %s15 = smul.addr %s14, 8
    %s16 = scalar_lea.vmem %s0, %s15
    %s17 = sadd.s32 0, 0
    %p18 = scmp.lt.s32.totalorder %s17, 0
    %s19 = scalar_select %p18, %s17, 0
    %s20 = smul.u32 2, %s19
  $region5: #{rmse_loss.1} parent=0 // pred_fallthru
    _
  // Predicated region
  $region6: #{rmse_loss.1} parent=0 // pred_check
    _
  $region7: #{rmse_loss.1} parent=0 // pred_check_branch
    %22 = sbr.rel (0) target = $region9
  $region8: #{rmse_loss.1} parent=0 // pred_region
    %s23 = sadd.s32 0, 0
    %p24 = scmp.lt.s32.totalorder %s23, 0
    %s25 = scalar_select %p24, %s23, 0
    %s26 = smul.u32 2, %s25
    %p27 = scmp.lt.s32.totalorder %s26, 1
    %s28 = scalar_select %p27, %s26, 1
    %s29 = smul.addr %s28, 8
    %s30 = scalar_lea.vmem %s1, %s29
    %s31 = sadd.s32 0, 0
    %p32 = scmp.lt.s32.totalorder %s31, 0
    %s33 = scalar_select %p32, %s31, 0
    %s34 = smul.u32 2, %s33
  $region9: #{rmse_loss.1} parent=0 // pred_fallthru
    _
  %s35 = sadd.s32 0, 0
  %p36 = scmp.lt.s32.totalorder %s35, 0
  %s37 = scalar_select %p36, %s35, 0
  %s38 = smul.u32 2, %s37
  %p39 = scmp.lt.s32.totalorder %s38, 1
  %s40 = scalar_select %p39, %s38, 1
  %s41 = smul.addr %s40, 8
  %s42 = scalar_lea.vmem %s0, %s41
  %s43 = sadd.s32 0, 0
  %p44 = scmp.lt.s32.totalorder %s43, 0
  %s45 = scalar_select %p44, %s43, 0
  %s46 = smul.u32 2, %s45
  %p47 = scmp.lt.s32.totalorder %s46, 1
  %s48 = scalar_select %p47, %s46, 1
  %s49 = smul.addr %s48, 8
  %s50 = scalar_lea.vmem %s1, %s49
  %s51 = sadd.s32 0, 0
  %p52 = scmp.lt.s32.totalorder %s51, 0
  %s53 = scalar_select %p52, %s51, 0
  %s54 = smul.u32 2, %s53
  %p55 = scmp.lt.s32.totalorder %s54, 1
  %s56 = scalar_select %p55, %s54, 1
  %s57 = smul.addr %s56, 8
  %s58 = scalar_lea.vmem %s0, %s57
  %s59 = sadd.s32 0, 0
  %p60 = scmp.lt.s32.totalorder %s59, 0
  %s61 = scalar_select %p60, %s59, 0
  %s62 = smul.u32 2, %s61
  %s63 = sadd.s32 0, 0
  %p64 = scmp.lt.s32.totalorder %s63, 0
  %s65 = scalar_select %p64, %s63, 0
  %s66 = smul.u32 2, %s65
  %p67 = scmp.lt.s32.totalorder %s66, 1
  %s68 = scalar_select %p67, %s66, 1
  %s69 = smul.addr %s68, 8
  %s70 = scalar_lea.vmem %s1, %s69
  %s71 = sadd.s32 0, 0
  %p72 = scmp.lt.s32.totalorder %s71, 0
  %s73 = scalar_select %p72, %s71, 0
  %s74 = smul.u32 2, %s73
  %p75 = scmp.eq.s32.totalorder 0, 0
  // Predicated region
  $region10: #{rmse_loss.1} parent=0 // pred_check
    %p76 = pneg %p75
  $region11: #{rmse_loss.1} parent=0 // pred_check_branch
    %78 = sbr.rel (%p76) target = $region13
  $region12: #{rmse_loss.1} parent=0 // pred_region
    %79 = vst [vmem:[%s2] sm:$0xff] 0.0
  $region13: #{rmse_loss.1} parent=0 // pred_fallthru
    _
  %s80 = sadd.s32 0, 0
  %s81 = smul.u32 %s80, 16
  %v82 = vlaneseq
  %v83 = vshrl.u32 %v82, 7
  %v84 = vadd.s32 %v83, 8
  %v85 = vld [vmem:[%s58] sm:$0xff]
  %v86 = vld [vmem:[%s58 + $0x8] sm:$0xff]
  %v87 = vld [vmem:[%s70] sm:$0xff]
  %v88 = vld [vmem:[%s70 + $0x8] sm:$0xff]
  %v89 = vsub.f32 %v85, %v87
  %v90 = vsub.f32 %v86, %v88
  %v91 = vmul.f32 %v89, %v89
  %v92 = vmul.f32 %v90, %v90
  %s93 = sadd.s32 %s81, 0
  %v94 = vstv %s93
  %v95 = vadd.s32 %v94, %v83
  %v96 = vadd.s32 %v94, %v84
  %vm97 = vcmp.lt.s32.totalorder %v95, 16
  %vm98 = vcmp.lt.s32.totalorder %v96, 16
  %v99 = vsel %vm97, 1, 0
  %v100 = vsel %vm98, 1, 0
  %vm101 = vcmp.eq.s32.totalorder %v99, 1
  %vm102 = vcmp.eq.s32.totalorder %v100, 1
  %v103 = vsel %vm101, %v91, 0.0
  %v104 = vsel %vm102, %v92, 0.0
  %v105 = vadd.f32 %v103, %v104
  %v106 = vadd.f32 %v105, 0.0
  %v107 = vld [vmem:[%s2] sm:$0xff]
  %v108 = vadd.f32 %v107, %v106
  %109 = vst [vmem:[%s2] sm:$0xff] %v108
  // Predicated region
  $region14: #{rmse_loss.1} parent=0 // pred_check
    _
  $region15: #{rmse_loss.1} parent=0 // pred_check_branch
    %111 = sbr.rel (0) target = $region17
  $region16: #{rmse_loss.1} parent=0 // pred_region
    _
  $region17: #{rmse_loss.1} parent=0 // pred_fallthru
    _
  // Predicated region
  $region18: #{rmse_loss.1} parent=0 // pred_check
    _
  $region19: #{rmse_loss.1} parent=0 // pred_check_branch
    %113 = sbr.rel (0) target = $region21
  $region20: #{rmse_loss.1} parent=0 // pred_region
    _
  $region21: #{rmse_loss.1} parent=0 // pred_fallthru
    _

</llo_original>
